<compile_context>
chip_gen: v7x
topology: tpu7x:2x2x1
jax: 0.10.0
libtpu: 0.0.40
codegen_flags: <defaults>
</compile_context>

<pallas_src>
import functools

import jax
import jax.numpy as jnp
from jax.experimental import pallas as pl
from jax.experimental.pallas import tpu as pltpu


K_PAD = 128  # lane-dense classifier / output width (sliced back in wrapper)


def _finetune_kernel(x_ref, w1t_ref, b1_ref, w2_ref, b2_ref, out_ref, acc_ref,
                     *, inv_hw, hw_valid, tile, lane_groups):
    # x_ref  : [C, TILE_HW]   pixel tile of one sample (pixels on lanes), bf16
    # w1t_ref: [F, C]         1x1 conv stem weight (PyTorch [F, C] orient), bf16
    # b1_ref : [F, 128]       stem bias, pre-broadcast lane-dense, f32
    # w2_ref : [F, K_PAD]     classifier weight, zero-padded to 128 classes, f32
    # b2_ref : [1, K_PAD]     classifier bias, zero-padded, f32
    # out_ref: [1, K_PAD]     logits row for this sample
    # acc_ref: [F, 128]       lane-parallel pooled-sum accumulator (VMEM f32)
    t = pl.program_id(1)

    @pl.when(t == 0)
    def _init():
        acc_ref[...] = jnp.zeros_like(acc_ref)

    # Stem 1x1 conv == [F, C] @ [C, TILE_HW] bf16 MXU matmul, f32 accumulation.
    h = jnp.dot(w1t_ref[...], x_ref[...], preferred_element_type=jnp.float32)

    if hw_valid is not None:
        # Lane-index iota, computed once per tile (only emitted when hw was
        # padded up to the tile boundary).
        lane_idx = jax.lax.broadcasted_iota(jnp.int32, (h.shape[0], 128), 1)

    # Per 128-lane group: bias + ReLU (+ pad mask), then lane-parallel
    # accumulation with plain VPU adds into the [F, 128] partial sum.
    # No per-tile XLU cross-lane reduce competing with MXU pushes.
    part = None
    for g in range(lane_groups):
        hg = h[:, g * 128:(g + 1) * 128] + b1_ref[...]
        hg = jnp.maximum(hg, 0.0)
        if hw_valid is not None:
            pix = lane_idx + (t * tile + g * 128)
            hg = jnp.where(pix < hw_valid, hg, 0.0)
        part = hg if part is None else part + hg
    acc_ref[...] += part

    @pl.when(t == pl.num_programs(1) - 1)
    def _finalize():
        # Single cross-lane reduce per sample, then the tiny classifier head:
        # lane-broadcast of pooled * w2, sublane reduce -> lane-dense [1, 128].
        pooled = jnp.sum(acc_ref[...], axis=1, keepdims=True) * inv_hw   # [F,1]
        logits = jnp.sum(w2_ref[...] * pooled, axis=0, keepdims=True)    # [1,K]
        out_ref[...] = logits + b2_ref[...]


def _default_tile_and_vmem():
    """Generation-aware (tile target, vmem_limit_bytes)."""
    try:
        kind = jax.devices()[0].device_kind.lower()
    except Exception:  # pragma: no cover - defensive
        kind = ""
    if ("v5" in kind) or ("v6" in kind):
        # 128 MiB VMEM: big tiles amortize the ~0.35us/step overhead.
        return 1024, 96 * 1024 * 1024
    # v7x (64 MiB VMEM) and unknown chips: conservative.
    return 512, 48 * 1024 * 1024


def _choose_tiling(hw, target):
    """Pad hw to a multiple of 256 and pick the largest multiple-of-256 tile
    that divides the padded hw and is <= target (min 256)."""
    hw_pad = -(-hw // 256) * 256
    best = 256
    t = 256
    limit = min(hw_pad, max(target, 256))
    while t <= limit:
        if hw_pad % t == 0:
            best = t
        t += 256
    return hw_pad, best


def finetune_forward(x_nchw, w1, b1, w2, b2, num_classes, *, tile_hw=None):
    """x_nchw: [N, C, H, W] float32 -> logits [N, num_classes]."""
    n, c, h, w = x_nchw.shape
    feat = w1.shape[1]
    hw = h * w

    default_tile, vmem_limit = _default_tile_and_vmem()
    target = default_tile if tile_hw is None else tile_hw
    hw_pad, tile = _choose_tiling(hw, target)
    n_t = hw_pad // tile
    lane_groups = tile // 128

    # NCHW -> [N, C, H*W] is a free reshape (same HBM layout); pad the pixel
    # axis to the tile boundary (padded pixels are masked inside the kernel so
    # the global-average-pool stays exact).
    x3 = x_nchw.reshape(n, c, hw)
    if hw_pad != hw:
        x3 = jnp.pad(x3, ((0, 0), (0, 0), (0, hw_pad - hw)))

    # bf16 HBM storage for the streamed operands: MXU-native on v6e/v7x and
    # halves the dominant HBM x stream on v5e.  f32 accumulation in-kernel.
    x3 = x3.astype(jnp.bfloat16)
    w1t = jnp.transpose(w1).astype(jnp.bfloat16)              # [F, C]

    # Small epilogue params stay f32; bias pre-broadcast lane-dense.
    b1f = jnp.broadcast_to(
        b1.astype(jnp.float32).reshape(feat, 1), (feat, 128))
    w2p = jnp.zeros((feat, K_PAD), jnp.float32).at[:, :num_classes].set(
        w2.astype(jnp.float32))
    b2p = jnp.zeros((1, K_PAD), jnp.float32).at[:, :num_classes].set(
        b2.astype(jnp.float32).reshape(1, -1))

    kernel = functools.partial(
        _finetune_kernel,
        inv_hw=1.0 / hw,
        hw_valid=hw if hw_pad != hw else None,
        tile=tile,
        lane_groups=lane_groups)

    flops = 2 * n * hw_pad * c * feat + 2 * n * feat * K_PAD
    bytes_accessed = (2 * (x3.size + w1t.size)                    # bf16 streams
                      + 4 * (b1f.size + w2p.size + b2p.size + n * K_PAD))

    out_padded = pl.pallas_call(
        kernel,
        out_shape=jax.ShapeDtypeStruct((n, 1, K_PAD), jnp.float32),
        grid_spec=pltpu.PrefetchScalarGridSpec(
            num_scalar_prefetch=0,
            grid=(n, n_t),                                # (batch, pixel tiles)
            in_specs=[
                # Streamed activation tile [C, TILE_HW], auto double-buffered.
                pl.BlockSpec((None, c, tile), lambda i, t: (i, 0, t)),
                # Small weights/biases stay resident in VMEM (constant index).
                pl.BlockSpec((feat, c), lambda i, t: (0, 0)),
                pl.BlockSpec((feat, 128), lambda i, t: (0, 0)),
                pl.BlockSpec((feat, K_PAD), lambda i, t: (0, 0)),
                pl.BlockSpec((1, K_PAD), lambda i, t: (0, 0)),
            ],
            # Same output block across the reduction axis; written only on the
            # last pixel tile of each sample.  Lane-dense (128-wide) store.
            out_specs=pl.BlockSpec((None, 1, K_PAD), lambda i, t: (i, 0, 0)),
            scratch_shapes=[pltpu.VMEM((feat, 128), jnp.float32)],
        ),
        compiler_params=pltpu.CompilerParams(
            dimension_semantics=("parallel", "arbitrary"),
            vmem_limit_bytes=vmem_limit,
        ),
        cost_estimate=pl.CostEstimate(
            flops=flops, transcendentals=0, bytes_accessed=bytes_accessed),
    )(x3, w1t, b1f, w2p, b2p)

    return out_padded[:, 0, :num_classes]


def reference_forward(x_nchw, w1, b1, w2, b2):
    # Pure-JAX reference mirroring PyTorch semantics (Conv2d 1x1 + ReLU,
    # adaptive avg pool (1,1), Linear), evaluated on the same bf16-rounded
    # streamed operands the kernel consumes, with f32 accumulation.
    xq = x_nchw.astype(jnp.bfloat16).astype(jnp.float32)
    w1q = w1.astype(jnp.bfloat16).astype(jnp.float32)
    x_nhwc = jnp.transpose(xq, (0, 2, 3, 1))                      # [N, H, W, C]
    hconv = jnp.einsum("nhwc,cf->nhwf", x_nhwc, w1q,
                       precision=jax.lax.Precision.HIGHEST) + b1
    hconv = jnp.maximum(hconv, 0.0)
    pooled = jnp.mean(hconv, axis=(1, 2))                         # [N, F]
    return jnp.dot(pooled, w2, precision=jax.lax.Precision.HIGHEST) + b2


if __name__ == "__main__":
    # Small shapes consistent with the module's forward (image NCHW input).
    N, C = 2, 4
    FEAT = 32           # backbone feature width (fc.in_features)
    NUM_CLASSES = 17    # num_classes ctor argument

    key = jax.random.PRNGKey(0)
    kx, kw1, kb1, kw2, kb2, kx2 = jax.random.split(key, 6)
    w1 = jax.random.normal(kw1, (C, FEAT), dtype=jnp.float32) * 0.1
    b1 = jax.random.normal(kb1, (FEAT,), dtype=jnp.float32) * 0.01
    # Linear(FEAT, NUM_CLASSES): PyTorch stores W as [K, F]; kept pre-transposed
    # as [F, K] so the head computes pooled @ W2 + b2.
    w2 = jax.random.normal(kw2, (FEAT, NUM_CLASSES), dtype=jnp.float32) * 0.1
    b2 = jax.random.normal(kb2, (NUM_CLASSES,), dtype=jnp.float32) * 0.01

    # 1) Multi-tile accumulate path: 32x32 spatial (hw=1024), tile forced to
    #    512 -> grid (2 samples, 2 pixel tiles per sample).
    x = jax.random.normal(kx, (N, C, 32, 32), dtype=jnp.float32)
    out = finetune_forward(x, w1, b1, w2, b2, NUM_CLASSES, tile_hw=512)
    out = jax.block_until_ready(out)
    ref = reference_forward(x, w1, b1, w2, b2)
    assert out.shape == (N, NUM_CLASSES)
    assert jnp.allclose(out, ref, atol=1e-3, rtol=1e-3), (
        f"max abs err (multi-tile) = {jnp.max(jnp.abs(out - ref))}")

    # 2) Pad + mask path: 14x14 spatial (hw=196 -> padded to 256, one tile).
    x2 = jax.random.normal(kx2, (N, C, 14, 14), dtype=jnp.float32)
    out2 = finetune_forward(x2, w1, b1, w2, b2, NUM_CLASSES)
    out2 = jax.block_until_ready(out2)
    ref2 = reference_forward(x2, w1, b1, w2, b2)
    assert out2.shape == (N, NUM_CLASSES)
    assert jnp.allclose(out2, ref2, atol=1e-3, rtol=1e-3), (
        f"max abs err (padded) = {jnp.max(jnp.abs(out2 - ref2))}")

    print("KERNEL_OK")
</pallas_src>

<mosaic_0001>
module attributes {stable_mosaic.version = 11 : i64} {
  func.func @_finetune_kernel(%arg0: i32, %arg1: i32, %arg2: memref<1x4x512xbf16, #tpu.memory_space<vmem>>, %arg3: memref<32x4xbf16, #tpu.memory_space<vmem>>, %arg4: memref<32x128xf32, #tpu.memory_space<vmem>>, %arg5: memref<32x128xf32, #tpu.memory_space<vmem>>, %arg6: memref<1x128xf32, #tpu.memory_space<vmem>>, %arg7: memref<1x1x128xf32, #tpu.memory_space<vmem>>, %arg8: memref<32x128xf32, #tpu.memory_space<vmem>>) attributes {dimension_semantics = [#tpu.dimension_semantics<parallel>, #tpu.dimension_semantics<arbitrary>], iteration_bounds = array<i64: 2, 2>, scalar_prefetch = 0 : i64, scratch_operands = 1 : i64, tpu.core_type = #tpu.core_type<tc>, window_params = [{transform_indices = @transform_0, window_bounds = array<i64: 1, 4, 512>}, {pipeline_mode = #tpu.pipeline_mode<synchronous>, transform_indices = @transform_1, window_bounds = array<i64: 32, 4>}, {pipeline_mode = #tpu.pipeline_mode<synchronous>, transform_indices = @transform_2, window_bounds = array<i64: 32, 128>}, {pipeline_mode = #tpu.pipeline_mode<synchronous>, transform_indices = @transform_3, window_bounds = array<i64: 32, 128>}, {pipeline_mode = #tpu.pipeline_mode<synchronous>, transform_indices = @transform_4, window_bounds = array<i64: 1, 128>}, {transform_indices = @transform_5, window_bounds = array<i64: 1, 1, 128>}]} {
    %c0_i32 = arith.constant 0 : i32
    %0 = arith.cmpi eq, %arg1, %c0_i32 : i32
    %1 = arith.extui %0 : i1 to i32
    %c0_i32_0 = arith.constant 0 : i32
    %2 = arith.cmpi ne, %1, %c0_i32_0 : i32
    scf.if %2 {
      %cst_22 = arith.constant 0.000000e+00 : f32
      %36 = vector.broadcast %cst_22 : f32 to vector<32x128xf32>
      %c0_23 = arith.constant 0 : index
      %c0_24 = arith.constant 0 : index
      %37 = vector.load %arg8[%c0_23, %c0_24] : memref<32x128xf32, #tpu.memory_space<vmem>>, vector<32x128xf32>
      tpu.vector_store %arg8[%c0_23, %c0_24], %36 {strides = array<i32>} : memref<32x128xf32, #tpu.memory_space<vmem>>, vector<32x128xf32>,
    } else {
    }
    %c0 = arith.constant 0 : index
    %c0_1 = arith.constant 0 : index
    %3 = vector.load %arg3[%c0, %c0_1] : memref<32x4xbf16, #tpu.memory_space<vmem>>, vector<32x4xbf16>
    %c0_2 = arith.constant 0 : index
    %c0_3 = arith.constant 0 : index
    %c0_4 = arith.constant 0 : index
    %4 = vector.load %arg2[%c0_2, %c0_3, %c0_4] : memref<1x4x512xbf16, #tpu.memory_space<vmem>>, vector<1x4x512xbf16>
    %5 = vector.shape_cast %4 : vector<1x4x512xbf16> to vector<4x512xbf16>
    %cst = arith.constant dense<0.000000e+00> : vector<32x512xf32>
    %6 = tpu.matmul %3, %5, %cst {dimension_numbers = #tpu.dot_dimension_numbers<[1], [0], [0], [1], [0, 0, 1, 1], [], []>} : vector<32x4xbf16>, vector<4x512xbf16>, vector<32x512xf32> -> vector<32x512xf32>
    %7 = vector.extract_strided_slice %6 {offsets = [0, 0], sizes = [32, 128], strides = [1, 1]} : vector<32x512xf32> to vector<32x128xf32>
    %c0_5 = arith.constant 0 : index
    %c0_6 = arith.constant 0 : index
    %8 = vector.load %arg4[%c0_5, %c0_6] : memref<32x128xf32, #tpu.memory_space<vmem>>, vector<32x128xf32>
    %9 = arith.addf %7, %8 : vector<32x128xf32>
    %cst_7 = arith.constant 0.000000e+00 : f32
    %10 = vector.broadcast %cst_7 : f32 to vector<32x128xf32>
    %11 = arith.maximumf %9, %10 : vector<32x128xf32>
    %12 = vector.extract_strided_slice %6 {offsets = [0, 128], sizes = [32, 128], strides = [1, 1]} : vector<32x512xf32> to vector<32x128xf32>
    %c0_8 = arith.constant 0 : index
    %c0_9 = arith.constant 0 : index
    %13 = vector.load %arg4[%c0_8, %c0_9] : memref<32x128xf32, #tpu.memory_space<vmem>>, vector<32x128xf32>
    %14 = arith.addf %12, %13 : vector<32x128xf32>
    %cst_10 = arith.constant 0.000000e+00 : f32
    %15 = vector.broadcast %cst_10 : f32 to vector<32x128xf32>
    %16 = arith.maximumf %14, %15 : vector<32x128xf32>
    %17 = arith.addf %11, %16 : vector<32x128xf32>
    %18 = vector.extract_strided_slice %6 {offsets = [0, 256], sizes = [32, 128], strides = [1, 1]} : vector<32x512xf32> to vector<32x128xf32>
    %c0_11 = arith.constant 0 : index
    %c0_12 = arith.constant 0 : index
    %19 = vector.load %arg4[%c0_11, %c0_12] : memref<32x128xf32, #tpu.memory_space<vmem>>, vector<32x128xf32>
    %20 = arith.addf %18, %19 : vector<32x128xf32>
    %cst_13 = arith.constant 0.000000e+00 : f32
    %21 = vector.broadcast %cst_13 : f32 to vector<32x128xf32>
    %22 = arith.maximumf %20, %21 : vector<32x128xf32>
    %23 = arith.addf %17, %22 : vector<32x128xf32>
    %24 = vector.extract_strided_slice %6 {offsets = [0, 384], sizes = [32, 128], strides = [1, 1]} : vector<32x512xf32> to vector<32x128xf32>
    %c0_14 = arith.constant 0 : index
    %c0_15 = arith.constant 0 : index
    %25 = vector.load %arg4[%c0_14, %c0_15] : memref<32x128xf32, #tpu.memory_space<vmem>>, vector<32x128xf32>
    %26 = arith.addf %24, %25 : vector<32x128xf32>
    %cst_16 = arith.constant 0.000000e+00 : f32
    %27 = vector.broadcast %cst_16 : f32 to vector<32x128xf32>
    %28 = arith.maximumf %26, %27 : vector<32x128xf32>
    %29 = arith.addf %23, %28 : vector<32x128xf32>
    %c0_17 = arith.constant 0 : index
    %c0_18 = arith.constant 0 : index
    %30 = vector.load %arg8[%c0_17, %c0_18] : memref<32x128xf32, #tpu.memory_space<vmem>>, vector<32x128xf32>
    %31 = arith.addf %30, %29 : vector<32x128xf32>
    %c0_19 = arith.constant 0 : index
    %c0_20 = arith.constant 0 : index
    %32 = vector.load %arg8[%c0_19, %c0_20] : memref<32x128xf32, #tpu.memory_space<vmem>>, vector<32x128xf32>
    tpu.vector_store %arg8[%c0_19, %c0_20], %31 {strides = array<i32>} : memref<32x128xf32, #tpu.memory_space<vmem>>, vector<32x128xf32>,
    %c1_i32 = arith.constant 1 : i32
    %33 = arith.cmpi eq, %arg1, %c1_i32 : i32
    %34 = arith.extui %33 : i1 to i32
    %c0_i32_21 = arith.constant 0 : i32
    %35 = arith.cmpi ne, %34, %c0_i32_21 : i32
    scf.if %35 {
      %c0_22 = arith.constant 0 : index
      %c0_23 = arith.constant 0 : index
      %36 = vector.load %arg8[%c0_22, %c0_23] : memref<32x128xf32, #tpu.memory_space<vmem>>, vector<32x128xf32>
      %cst_24 = arith.constant dense<0.000000e+00> : vector<32xf32>
      %37 = vector.multi_reduction <add>, %36, %cst_24 [1] : vector<32x128xf32> to vector<32xf32>
      %38 = vector.shape_cast %37 : vector<32xf32> to vector<32x1xf32>
      %cst_25 = arith.constant 9.765625E-4 : f32
      %39 = vector.broadcast %cst_25 : f32 to vector<32x1xf32>
      %40 = arith.mulf %38, %39 : vector<32x1xf32>
      %c0_26 = arith.constant 0 : index
      %c0_27 = arith.constant 0 : index
      %41 = vector.load %arg5[%c0_26, %c0_27] : memref<32x128xf32, #tpu.memory_space<vmem>>, vector<32x128xf32>
      %42 = vector.broadcast %40 : vector<32x1xf32> to vector<32x128xf32>
      %43 = arith.mulf %41, %42 : vector<32x128xf32>
      %cst_28 = arith.constant dense<0.000000e+00> : vector<128xf32>
      %44 = vector.multi_reduction <add>, %43, %cst_28 [0] : vector<32x128xf32> to vector<128xf32>
      %45 = vector.shape_cast %44 : vector<128xf32> to vector<1x128xf32>
      %c0_29 = arith.constant 0 : index
      %c0_30 = arith.constant 0 : index
      %46 = vector.load %arg6[%c0_29, %c0_30] : memref<1x128xf32, #tpu.memory_space<vmem>>, vector<1x128xf32>
      %47 = arith.addf %45, %46 : vector<1x128xf32>
      %c0_31 = arith.constant 0 : index
      %c0_32 = arith.constant 0 : index
      %c0_33 = arith.constant 0 : index
      %48 = vector.load %arg7[%c0_31, %c0_32, %c0_33] : memref<1x1x128xf32, #tpu.memory_space<vmem>>, vector<1x1x128xf32>
      %49 = vector.shape_cast %48 : vector<1x1x128xf32> to vector<1x128xf32>
      %50 = vector.shape_cast %47 : vector<1x128xf32> to vector<1x1x128xf32>
      tpu.vector_store %arg7[%c0_31, %c0_32, %c0_33], %50 {strides = array<i32>} : memref<1x1x128xf32, #tpu.memory_space<vmem>>, vector<1x1x128xf32>,
    } else {
    }
    return
  }
  func.func @transform_0(%arg0: i32, %arg1: i32) -> (i32, i32, i32) {
    %c0_i32 = arith.constant 0 : i32
    %c0_i32_0 = arith.constant 0 : i32
    return %arg0, %c0_i32, %arg1 : i32, i32, i32
  }
  func.func @transform_1(%arg0: i32, %arg1: i32) -> (i32, i32) {
    %c0_i32 = arith.constant 0 : i32
    %c0_i32_0 = arith.constant 0 : i32
    %c0_i32_1 = arith.constant 0 : i32
    return %c0_i32, %c0_i32_0 : i32, i32
  }
  func.func @transform_2(%arg0: i32, %arg1: i32) -> (i32, i32) {
    %c0_i32 = arith.constant 0 : i32
    %c0_i32_0 = arith.constant 0 : i32
    %c0_i32_1 = arith.constant 0 : i32
    return %c0_i32, %c0_i32_0 : i32, i32
  }
  func.func @transform_3(%arg0: i32, %arg1: i32) -> (i32, i32) {
    %c0_i32 = arith.constant 0 : i32
    %c0_i32_0 = arith.constant 0 : i32
    %c0_i32_1 = arith.constant 0 : i32
    return %c0_i32, %c0_i32_0 : i32, i32
  }
  func.func @transform_4(%arg0: i32, %arg1: i32) -> (i32, i32) {
    %c0_i32 = arith.constant 0 : i32
    %c0_i32_0 = arith.constant 0 : i32
    %c0_i32_1 = arith.constant 0 : i32
    return %c0_i32, %c0_i32_0 : i32, i32
  }
  func.func @transform_5(%arg0: i32, %arg1: i32) -> (i32, i32, i32) {
    %c0_i32 = arith.constant 0 : i32
    %c0_i32_0 = arith.constant 0 : i32
    %c0_i32_1 = arith.constant 0 : i32
    return %arg0, %c0_i32, %c0_i32_0 : i32, i32, i32
  }
}

</mosaic_0001>

<llo_original>
// kernel: tpu_custom_call.1
$region0: #{tpu_custom_call.1}
  #allocation0 [shape = 'u32[]', space=smem, size = 0x4, offset = 0x4, fixed_abs, tag = 'smem constant byte address 0x4 - core index']
  #allocation1 [shape = 'u32[144,128]{1,0:T(1,128)}', space=vmem, size = 0x12000, scoped, tag = 'internal scratch']
  #allocation2 [shape = 'f32[32,128]{1,0:T(8,128)}', space=vmem, size = 0x4000, scoped, tag = 'scratch operand']
  %s0 = inlined_call_operand.hbm [shape: bf16[2,4,1024], index: 0, kind: input, shape index: {}]
  %s1 = inlined_call_operand.vmem [shape: bf16[32,4], index: 1, kind: input, shape index: {}]
  %s2 = inlined_call_operand.hbm [shape: f32[32,128], index: 2, kind: input, shape index: {}]
  %s3 = inlined_call_operand.hbm [shape: f32[32,128], index: 3, kind: input, shape index: {}]
  %s4 = inlined_call_operand.vmem [shape: f32[1,128], index: 4, kind: input, shape index: {}]
  %s5 = inlined_call_operand.hbm [shape: f32[2,1,128], index: 5, kind: output, shape index: {}]
  %s6 = sld [smem:[#allocation0]]
  $region73: #{tpu_custom_call.1} parent=0
    _
  %s8 = ssub.s32 1, %s6
  %s9 = scalar_select 0, %s8, %s6
  $region1: #{tpu_custom_call.1} parent=0
    #allocation3 [shape = 'u8[8192]{0}', space=vmem, size = 0x2000, scoped, tag = 'input window, operand 0']
    #allocation4 [shape = 's32[2]{0}', space=sflag, size = 0x8, scoped, tag = 'scoped memory for tpu_custom_call.1']
    #allocation5 [shape = 's32[2]{0}', space=sflag, size = 0x8, scoped, tag = 'scoped memory for tpu_custom_call.1']
    #allocation6 [shape = 'u8[16384]{0}', space=vmem, size = 0x4000, scoped, tag = 'input window, operand 2, single buffered']
    #allocation7 [shape = 's32[1]{0}', space=sflag, size = 0x4, scoped, tag = 'scoped memory for tpu_custom_call.1']
    #allocation8 [shape = 'u8[16384]{0}', space=vmem, size = 0x4000, scoped, tag = 'input window, operand 3, single buffered']
    #allocation9 [shape = 'u8[1024]{0}', space=vmem, size = 0x400, scoped, tag = 'output window, operand 0']
    %10 = vsyncpa [#allocation4], 0
    %s11 = scalar_lea.sflag [#allocation4], 1
    %12 = vsyncpa %s11, 0
    %13 = vsyncpa [#allocation7], 0
    %14 = vsyncpa [#allocation5], 0
    %s15 = scalar_lea.sflag [#allocation5], 1
    %16 = vsyncpa %s15, 0
    loop: start=0, step=1, limit=6
    $region2: #{tpu_custom_call.1} parent=1 // loop_pre_header
      _
    $region3: #{tpu_custom_call.1} parent=1 // loop_header
      %s18 = sphi 0, %s22
      %p19 = scmp.ge.s32.totalorder %s18, 6
      %s25 = sphi 0, %s37
      %s26 = sphi 0, %s33
      %s27 = sphi 0, %s25
      %s28 = sphi 0, %s26
      %s29 = sphi 0, %s27
      %s30 = sphi 0, %s28
      %s42 = sphi 0, %s44
      %s45 = sphi 0, %s42
      %s46 = sphi 0, %s45
      %s62 = sphi 0, %s46
      %s66 = sphi 0, %s66
      %s68 = sphi 0, %s66
      %s69 = sphi 0, %s68
      %s83 = sphi 0, %s69
      %s87 = sphi 0, %s87
      %s89 = sphi 0, %s87
      %s90 = sphi 0, %s89
      %s104 = sphi 0, %s90
      %s108 = sphi 0, %s108
      %s110 = sphi 0, %s108
      %s111 = sphi 0, %s110
      %s125 = sphi 0, %s111
      %s129 = sphi 0, %s129
      %s131 = sphi 0, %s129
      %s132 = sphi 0, %s131
      %s146 = sphi 0, %s132
      %s152 = sphi 0, %s154
      %s155 = sphi 0, %s152
      %s156 = sphi 0, %s155
      %s172 = sphi 0, %s156
    $region4: #{tpu_custom_call.1} parent=1 // loop_header_branch
      %21 = sbr.rel (%p19) target = $region8
    $region5: #{tpu_custom_call.1} parent=1 // loop_body
      %s23 = ssub.s32 %s18, 1
      %s24 = ssub.s32 %s18, 2
      %s31 = sadd.s32 1, %s26
      %p32 = scmp.ge.s32.totalorder %s31, 2
      %s33 = scalar_select %p32, 0, %s31
      %s34 = sadd.s32 1, %s25
      %s35 = scalar_select %p32, %s34, %s25
      %p36 = scmp.ge.s32.totalorder %s35, 2
      %s37 = scalar_select %p36, 0, %s35
      %s38 = ssub.s32 %s25, %s37
      %s39 = ssub.s32 %s26, %s33
      %s40 = sor.u32 %s38, %s39
      %p41 = scmp.eq.s32.totalorder %s40, 0
      %s43 = sadd.s32 %s42, 1
      %s44 = scalar_select %p41, %s42, %s43
      %p47 = pneg %p41
      %p48 = scmp.eq.s32.totalorder %s18, 3
      %p49 = por %p47, %p48
      %p50 = scmp.ne.s32.totalorder %s42, %s45
      %p51 = scmp.eq.s32.totalorder %s18, 0
      %p52 = por %p50, %p51
      %p53 = scmp.ne.s32.totalorder %s42, %s45
      %p54 = scmp.eq.s32.totalorder %s23, 3
      %p55 = por %p53, %p54
      %p56 = scmp.ne.s32.totalorder %s45, %s46
      %p57 = scmp.eq.s32.totalorder %s23, 0
      %p58 = por %p56, %p57
      %p59 = scmp.ne.s32.totalorder %s45, %s46
      %p60 = scmp.eq.s32.totalorder %s24, 3
      %p61 = por %p59, %p60
      %p63 = scmp.ne.s32.totalorder %s46, %s62
      %p64 = scmp.eq.s32.totalorder %s24, 0
      %p65 = por %p63, %p64
      %s67 = sadd.s32 %s66, 1
      %p70 = scmp.eq.s32.totalorder %s18, 3
      %p71 = scmp.ne.s32.totalorder %s66, %s68
      %p72 = scmp.eq.s32.totalorder %s18, 0
      %p73 = por %p71, %p72
      %p74 = scmp.ne.s32.totalorder %s66, %s68
      %p75 = scmp.eq.s32.totalorder %s23, 3
      %p76 = por %p74, %p75
      %p77 = scmp.ne.s32.totalorder %s68, %s69
      %p78 = scmp.eq.s32.totalorder %s23, 0
      %p79 = por %p77, %p78
      %p80 = scmp.ne.s32.totalorder %s68, %s69
      %p81 = scmp.eq.s32.totalorder %s24, 3
      %p82 = por %p80, %p81
      %p84 = scmp.ne.s32.totalorder %s69, %s83
      %p85 = scmp.eq.s32.totalorder %s24, 0
      %p86 = por %p84, %p85
      %s88 = sadd.s32 %s87, 1
      %p91 = scmp.eq.s32.totalorder %s18, 3
      %p92 = scmp.ne.s32.totalorder %s87, %s89
      %p93 = scmp.eq.s32.totalorder %s18, 0
      %p94 = por %p92, %p93
      %p95 = scmp.ne.s32.totalorder %s87, %s89
      %p96 = scmp.eq.s32.totalorder %s23, 3
      %p97 = por %p95, %p96
      %p98 = scmp.ne.s32.totalorder %s89, %s90
      %p99 = scmp.eq.s32.totalorder %s23, 0
      %p100 = por %p98, %p99
      %p101 = scmp.ne.s32.totalorder %s89, %s90
      %p102 = scmp.eq.s32.totalorder %s24, 3
      %p103 = por %p101, %p102
      %p105 = scmp.ne.s32.totalorder %s90, %s104
      %p106 = scmp.eq.s32.totalorder %s24, 0
      %p107 = por %p105, %p106
      %s109 = sadd.s32 %s108, 1
      %p112 = scmp.eq.s32.totalorder %s18, 3
      %p113 = scmp.ne.s32.totalorder %s108, %s110
      %p114 = scmp.eq.s32.totalorder %s18, 0
      %p115 = por %p113, %p114
      %p116 = scmp.ne.s32.totalorder %s108, %s110
      %p117 = scmp.eq.s32.totalorder %s23, 3
      %p118 = por %p116, %p117
      %p119 = scmp.ne.s32.totalorder %s110, %s111
      %p120 = scmp.eq.s32.totalorder %s23, 0
      %p121 = por %p119, %p120
      %p122 = scmp.ne.s32.totalorder %s110, %s111
      %p123 = scmp.eq.s32.totalorder %s24, 3
      %p124 = por %p122, %p123
      %p126 = scmp.ne.s32.totalorder %s111, %s125
      %p127 = scmp.eq.s32.totalorder %s24, 0
      %p128 = por %p126, %p127
      %s130 = sadd.s32 %s129, 1
      %p133 = scmp.eq.s32.totalorder %s18, 3
      %p134 = scmp.ne.s32.totalorder %s129, %s131
      %p135 = scmp.eq.s32.totalorder %s18, 0
      %p136 = por %p134, %p135
      %p137 = scmp.ne.s32.totalorder %s129, %s131
      %p138 = scmp.eq.s32.totalorder %s23, 3
      %p139 = por %p137, %p138
      %p140 = scmp.ne.s32.totalorder %s131, %s132
      %p141 = scmp.eq.s32.totalorder %s23, 0
      %p142 = por %p140, %p141
      %p143 = scmp.ne.s32.totalorder %s131, %s132
      %p144 = scmp.eq.s32.totalorder %s24, 3
      %p145 = por %p143, %p144
      %p147 = scmp.ne.s32.totalorder %s132, %s146
      %p148 = scmp.eq.s32.totalorder %s24, 0
      %p149 = por %p147, %p148
      %s150 = ssub.s32 %s25, %s37
      %p151 = scmp.eq.s32.totalorder %s150, 0
      %s153 = sadd.s32 %s152, 1
      %s154 = scalar_select %p151, %s152, %s153
      %p157 = pneg %p151
      %p158 = scmp.eq.s32.totalorder %s18, 3
      %p159 = por %p157, %p158
      %p160 = scmp.ne.s32.totalorder %s152, %s155
      %p161 = scmp.eq.s32.totalorder %s18, 0
      %p162 = por %p160, %p161
      %p163 = scmp.ne.s32.totalorder %s152, %s155
      %p164 = scmp.eq.s32.totalorder %s23, 3
      %p165 = por %p163, %p164
      %p166 = scmp.ne.s32.totalorder %s155, %s156
      %p167 = scmp.eq.s32.totalorder %s23, 0
      %p168 = por %p166, %p167
      %p169 = scmp.ne.s32.totalorder %s155, %s156
      %p170 = scmp.eq.s32.totalorder %s24, 3
      %p171 = por %p169, %p170
      %p173 = scmp.ne.s32.totalorder %s156, %s172
      %p174 = scmp.eq.s32.totalorder %s24, 0
      %p175 = por %p173, %p174
      %p176 = scmp.le.s32.totalorder 1, %s18
      %p177 = scmp.lt.s32.totalorder %s18, 5
      %p178 = pnand %p176, %p177
      %p179 = pneg %p178
      // Predicated region
      $region9: #{tpu_custom_call.1} parent=5 // pred_check
        _
      $region10: #{tpu_custom_call.1} parent=5 // pred_check_branch
        %181 = sbr.rel (%p178) target = $region12
      $region11: #{tpu_custom_call.1} parent=5 // pred_region
        %s182 = ssub.s32 %s18, 1
        // Predicated region
        $region13: #{tpu_custom_call.1} parent=11 // pred_check
          %p183 = pneg %p79
        $region14: #{tpu_custom_call.1} parent=11 // pred_check_branch
          %185 = sbr.rel (%p183) target = $region16
        $region15: #{tpu_custom_call.1} parent=11 // pred_region
          _
        $region16: #{tpu_custom_call.1} parent=11 // pred_fallthru
          _
        // Predicated region
        $region17: #{tpu_custom_call.1} parent=11 // pred_check
          %p186 = pneg %p100
        $region18: #{tpu_custom_call.1} parent=11 // pred_check_branch
          %188 = sbr.rel (%p186) target = $region20
        $region19: #{tpu_custom_call.1} parent=11 // pred_region
          %s190 = ssub.s32 512, 512
          %191 = vsyncadd [#allocation7], %s190
          %s192 = sshll.u32 [#allocation6], 4
          %s193 = int_to_ptr.vmem [resolvable:$true] %s192
          %198 = dma.hbm_to_vmem [thread:$0]  %s2, 512, %s193, [#allocation7], 128, 128, 8
        $region20: #{tpu_custom_call.1} parent=11 // pred_fallthru
          _
        // Predicated region
        $region21: #{tpu_custom_call.1} parent=11 // pred_check
          %p199 = pneg %p121
        $region22: #{tpu_custom_call.1} parent=11 // pred_check_branch
          %201 = sbr.rel (%p199) target = $region24
        $region23: #{tpu_custom_call.1} parent=11 // pred_region
          %s203 = ssub.s32 512, 512
          %204 = vsyncadd [#allocation7], %s203
          %s205 = sshll.u32 [#allocation8], 4
          %s206 = int_to_ptr.vmem [resolvable:$true] %s205
          %211 = dma.hbm_to_vmem [thread:$0]  %s3, 512, %s206, [#allocation7], 128, 128, 8
        $region24: #{tpu_custom_call.1} parent=11 // pred_fallthru
          _
        // Predicated region
        $region25: #{tpu_custom_call.1} parent=11 // pred_check
          %p212 = pneg %p142
        $region26: #{tpu_custom_call.1} parent=11 // pred_check_branch
          %214 = sbr.rel (%p212) target = $region28
        $region27: #{tpu_custom_call.1} parent=11 // pred_region
          _
        $region28: #{tpu_custom_call.1} parent=11 // pred_fallthru
          _
      $region12: #{tpu_custom_call.1} parent=5 // pred_fallthru
        _
      %p215 = scmp.lt.s32.totalorder %s18, 4
      // Predicated region
      $region29: #{tpu_custom_call.1} parent=5 // pred_check
        %p216 = pneg %p215
      $region30: #{tpu_custom_call.1} parent=5 // pred_check_branch
        %218 = sbr.rel (%p216) target = $region32
      $region31: #{tpu_custom_call.1} parent=5 // pred_region
        // Predicated region
        $region33: #{tpu_custom_call.1} parent=31 // pred_check
          %p219 = pneg %p52
        $region34: #{tpu_custom_call.1} parent=31 // pred_check_branch
          %221 = sbr.rel (%p219) target = $region36
        $region35: #{tpu_custom_call.1} parent=31 // pred_region
          %s222 = sand.u32 %s42, 1
          %s223 = scalar_lea.sflag [#allocation4], %s222
          %s224 = sand.u32 %s42, 1
          %s225 = smul.addr %s224, 8
          %s226 = scalar_lea.vmem [#allocation3], %s225
          %s227 = smul.u32 4, %s26
          %s229 = ssub.s32 128, 128
          %230 = vsyncadd %s223, %s229
          %s231 = smul.addr %s25, 8
          %s232 = sadd.s32 %s227, %s231
          %s233 = smul.addr %s232, 32
          %s234 = scalar_lea.hbm %s0, %s233
          %s236 = sshll.u32 %s226, 4
          %s237 = int_to_ptr.vmem [resolvable:$true] %s236
          %239 = dma.hbm_to_vmem [thread:$0]  %s234, 128, %s237, %s223
        $region36: #{tpu_custom_call.1} parent=31 // pred_fallthru
          _
      $region32: #{tpu_custom_call.1} parent=5 // pred_fallthru
        _
      %p240 = scmp.le.s32.totalorder 1, %s18
      %p241 = scmp.lt.s32.totalorder %s18, 5
      %p242 = pnand %p240, %p241
      %p243 = pneg %p242
      // Predicated region
      $region37: #{tpu_custom_call.1} parent=5 // pred_check
        _
      $region38: #{tpu_custom_call.1} parent=5 // pred_check_branch
        %245 = sbr.rel (%p242) target = $region40
      $region39: #{tpu_custom_call.1} parent=5 // pred_region
        %s246 = ssub.s32 %s18, 1
        %s247 = sand.u32 %s45, 1
        %s248 = scalar_lea.sflag [#allocation4], %s247
        %s249 = sand.u32 %s45, 1
        %s250 = smul.addr %s249, 8
        %s251 = scalar_lea.vmem [#allocation3], %s250
        // Predicated region
        $region41: #{tpu_custom_call.1} parent=39 // pred_check
          %p252 = pneg %p58
        $region42: #{tpu_custom_call.1} parent=39 // pred_check_branch
          %254 = sbr.rel (%p252) target = $region44
        $region43: #{tpu_custom_call.1} parent=39 // pred_region
          %255 = dma.done %s248, 128
        $region44: #{tpu_custom_call.1} parent=39 // pred_fallthru
          _
        // Predicated region
        $region45: #{tpu_custom_call.1} parent=39 // pred_check
          %p256 = pneg %p100
        $region46: #{tpu_custom_call.1} parent=39 // pred_check_branch
          %258 = sbr.rel (%p256) target = $region48
        $region47: #{tpu_custom_call.1} parent=39 // pred_region
          %259 = dma.done [#allocation7], 512
        $region48: #{tpu_custom_call.1} parent=39 // pred_fallthru
          _
        // Predicated region
        $region49: #{tpu_custom_call.1} parent=39 // pred_check
          %p260 = pneg %p121
        $region50: #{tpu_custom_call.1} parent=39 // pred_check_branch
          %262 = sbr.rel (%p260) target = $region52
        $region51: #{tpu_custom_call.1} parent=39 // pred_region
          %263 = dma.done [#allocation7], 512
        $region52: #{tpu_custom_call.1} parent=39 // pred_fallthru
          _
        %s264 = sand.u32 %s45, 1
        %s265 = scalar_lea.sflag [#allocation4], %s264
        %s266 = sand.u32 %s45, 1
        %s267 = smul.addr %s266, 8
        %s268 = scalar_lea.vmem [#allocation3], %s267
        %p269 = pneg %p58
        %p270 = pneg %p55
        %p271 = pneg %p79
        %p272 = pneg %p76
        %p273 = pneg %p100
        %p274 = pneg %p97
        %p275 = pneg %p121
        %p276 = pneg %p118
        %p277 = pneg %p142
        %p278 = pneg %p139
        %p279 = pneg %p168
        %p280 = pneg %p165
        %s281 = sand.u32 %s155, 1
        %s282 = scalar_lea.sflag [#allocation5], %s281
        %s283 = sand.u32 %s155, 1
        %s284 = scalar_lea.vmem [#allocation9], %s283
        %s285 = smul.u32 4, %s28
        %p287 = scmp.eq.s32.totalorder %s28, 0
        // Predicated region
        $region53: #{tpu_custom_call.1} parent=39 // pred_check
          %p288 = pneg %p287
        $region54: #{tpu_custom_call.1} parent=39 // pred_check_branch
          %290 = sbr.rel (%p288) target = $region56
        $region55: #{tpu_custom_call.1} parent=39 // pred_region
          %291 = vst [vmem:[#allocation2] sm:$0xff] 0.0
          %292 = vst [vmem:[#allocation2 + $0x8] sm:$0xff] 0.0
          %293 = vst [vmem:[#allocation2 + $0x10] sm:$0xff] 0.0
          %294 = vst [vmem:[#allocation2 + $0x18] sm:$0xff] 0.0
        $region56: #{tpu_custom_call.1} parent=39 // pred_fallthru
          _
        %v295 = vld [vmem:[%s1] sm:$0xf]
        %v296 = vld [vmem:[%s1 + $0x4] sm:$0xf]
        %v297 = vld [vmem:[%s1 + $0x8] sm:$0xf]
        %v298 = vld [vmem:[%s1 + $0xc] sm:$0xf]
        %v299 = vld [vmem:[%s251] sm:$0xff]
        %v304 = vunpack.c.l.b16 %v295
        %v305 = vunpack.c.l.b16 %v296
        %v306 = vunpack.c.l.b16 %v297
        %v307 = vunpack.c.l.b16 %v298
        %v308 = vpack.c.b16 %v305, %v304
        %v309 = vpack.c.b16 %v307, %v306
        %v311 = vcombine.high %v299, %v299
        %v313 = vunpack.c.l.s4 1983009808
        %v314 = vunpack.c.0.s8 %v313
        %v315 = vlaneseq
        %v316 = vshrl.u32 %v315, 7
        %v317 = vsub.s32 %v314, %v316
        %v318 = vrot.slane %v299, %v317
        %v320 = vunpack.c.l.s4 1983009808
        %v321 = vunpack.c.0.s8 %v320
        %v322 = vlaneseq
        %v323 = vshrl.u32 %v322, 7
        %v324 = vsub.s32 %v321, %v323
        %v325 = vrot.slane %v311, %v324
        %v326 = vcombine.high %v318, %v318
        %v327 = vcombine.high %v325, %v325
        %vm328 = vcmask 31744
        %v330 = vsel %vm328, %v308, 0
        %v333 = vsel %vm328, %v309, 0
        %vm335 = vcmask 1041408
        %v337 = vsel %vm335, %v318, 0
        %v340 = vsel %vm335, %v326, 0
        %v343 = vsel %vm335, %v325, 0
        %v346 = vsel %vm335, %v327, 0
        %348 = vmatprep.subr.bf16.mxu0 %v340
        %349 = vmatpush1.bf16.msra.mxu0 %v337
        %350 = vmatprep.subr.bf16.mxu0 0
        %351 = vmatpush1.bf16.msra.mxu0 0
        %352 = vmatprep.subr.bf16.mxu0 0
        %353 = vmatpush1.bf16.msra.mxu0 0
        %354 = vmatprep.subr.bf16.mxu0 0
        %355 = vmatpush1.bf16.msra.mxu0 0
        %356 = vmatprep.subr.bf16.mxu0 0
        %357 = vmatpush1.bf16.msra.mxu0 0
        %358 = vmatprep.subr.bf16.mxu0 0
        %359 = vmatpush1.bf16.msra.mxu0 0
        %360 = vmatprep.subr.bf16.mxu0 0
        %361 = vmatpush1.bf16.msra.mxu0 0
        %362 = vmatprep.subr.bf16.mxu0 0
        %363 = vmatpush1.bf16.msra.mxu0 0
        %364 = vmatprep.subr.bf16.mxu0 0
        %365 = vmatpush1.bf16.msra.mxu0 0
        %366 = vmatprep.subr.bf16.mxu0 0
        %367 = vmatpush1.bf16.msra.mxu0 0
        %368 = vmatprep.subr.bf16.mxu0 0
        %369 = vmatpush1.bf16.msra.mxu0 0
        %370 = vmatprep.subr.bf16.mxu0 0
        %371 = vmatpush1.bf16.msra.mxu0 0
        %372 = vmatprep.subr.bf16.mxu0 0
        %373 = vmatpush1.bf16.msra.mxu0 0
        %374 = vmatprep.subr.bf16.mxu0 0
        %375 = vmatpush1.bf16.msra.mxu0 0
        %376 = vmatprep.subr.bf16.mxu0 0
        %377 = vmatpush1.bf16.msra.mxu0 0
        %378 = vmatprep.subr.bf16.mxu0 0
        %379 = vmatpush1.bf16.msra.mxu0 0
        %380 = vmatprep.mubr.bf16.mxu0 0
        %381 = vmatmul.mubr.bf16.gmra.mrb[0].mxu0 %v330
        %v382 = vpop.f32.mrb[0].mxu0
        %v383 = vadd.f32 0.0, %v382
        %v384 = vpop.f32.mrb[0].mxu0
        %v385 = vadd.f32 0.0, %v384
        %v386 = vpop.f32.mrb[0].mxu0
        %v387 = vadd.f32 0.0, %v386
        %v388 = vpop.f32.mrb[0].mxu0
        %v389 = vadd.f32 0.0, %v388
        %390 = vmatprep.mubr.bf16.mxu0 0
        %391 = vmatmul.mubr.bf16.gmra.mrb[0].mxu0 %v333
        %v392 = vpop.f32.mrb[0].mxu0
        %v393 = vadd.f32 0.0, %v392
        %v394 = vpop.f32.mrb[0].mxu0
        %v395 = vadd.f32 0.0, %v394
        %v396 = vpop.f32.mrb[0].mxu0
        %v397 = vadd.f32 0.0, %v396
        %v398 = vpop.f32.mrb[0].mxu0
        %v399 = vadd.f32 0.0, %v398
        %400 = vdwg.mxu0
        %401 = vmatprep.subr.bf16.mxu0 %v346
        %402 = vmatpush1.bf16.msra.mxu0 %v343
        %403 = vmatprep.subr.bf16.mxu0 0
        %404 = vmatpush1.bf16.msra.mxu0 0
        %405 = vmatprep.subr.bf16.mxu0 0
        %406 = vmatpush1.bf16.msra.mxu0 0
        %407 = vmatprep.subr.bf16.mxu0 0
        %408 = vmatpush1.bf16.msra.mxu0 0
        %409 = vmatprep.subr.bf16.mxu0 0
        %410 = vmatpush1.bf16.msra.mxu0 0
        %411 = vmatprep.subr.bf16.mxu0 0
        %412 = vmatpush1.bf16.msra.mxu0 0
        %413 = vmatprep.subr.bf16.mxu0 0
        %414 = vmatpush1.bf16.msra.mxu0 0
        %415 = vmatprep.subr.bf16.mxu0 0
        %416 = vmatpush1.bf16.msra.mxu0 0
        %417 = vmatprep.subr.bf16.mxu0 0
        %418 = vmatpush1.bf16.msra.mxu0 0
        %419 = vmatprep.subr.bf16.mxu0 0
        %420 = vmatpush1.bf16.msra.mxu0 0
        %421 = vmatprep.subr.bf16.mxu0 0
        %422 = vmatpush1.bf16.msra.mxu0 0
        %423 = vmatprep.subr.bf16.mxu0 0
        %424 = vmatpush1.bf16.msra.mxu0 0
        %425 = vmatprep.subr.bf16.mxu0 0
        %426 = vmatpush1.bf16.msra.mxu0 0
        %427 = vmatprep.subr.bf16.mxu0 0
        %428 = vmatpush1.bf16.msra.mxu0 0
        %429 = vmatprep.subr.bf16.mxu0 0
        %430 = vmatpush1.bf16.msra.mxu0 0
        %431 = vmatprep.subr.bf16.mxu0 0
        %432 = vmatpush1.bf16.msra.mxu0 0
        %433 = vmatprep.mubr.bf16.mxu0 0
        %434 = vmatmul.mubr.bf16.gmra.mrb[0].mxu0 %v330
        %v435 = vpop.f32.mrb[0].mxu0
        %v436 = vadd.f32 0.0, %v435
        %v437 = vpop.f32.mrb[0].mxu0
        %v438 = vadd.f32 0.0, %v437
        %v439 = vpop.f32.mrb[0].mxu0
        %v440 = vadd.f32 0.0, %v439
        %v441 = vpop.f32.mrb[0].mxu0
        %v442 = vadd.f32 0.0, %v441
        %443 = vmatprep.mubr.bf16.mxu0 0
        %444 = vmatmul.mubr.bf16.gmra.mrb[0].mxu0 %v333
        %v445 = vpop.f32.mrb[0].mxu0
        %v446 = vadd.f32 0.0, %v445
        %v447 = vpop.f32.mrb[0].mxu0
        %v448 = vadd.f32 0.0, %v447
        %v449 = vpop.f32.mrb[0].mxu0
        %v450 = vadd.f32 0.0, %v449
        %v451 = vpop.f32.mrb[0].mxu0
        %v452 = vadd.f32 0.0, %v451
        %453 = vdwg.mxu0
        %v454 = vld [vmem:[#allocation6] sm:$0xff]
        %v455 = vld [vmem:[#allocation6 + $0x8] sm:$0xff]
        %v456 = vld [vmem:[#allocation6 + $0x10] sm:$0xff]
        %v457 = vld [vmem:[#allocation6 + $0x18] sm:$0xff]
        %v458 = vadd.f32 %v383, %v454
        %v459 = vadd.f32 %v387, %v455
        %v460 = vadd.f32 %v393, %v456
        %v461 = vadd.f32 %v397, %v457
        %v462 = vmax.f32 %v458, 0.0
        %v463 = vmax.f32 %v459, 0.0
        %v464 = vmax.f32 %v460, 0.0
        %v465 = vmax.f32 %v461, 0.0
        %v466 = vadd.f32 %v385, %v454
        %v467 = vadd.f32 %v389, %v455
        %v468 = vadd.f32 %v395, %v456
        %v469 = vadd.f32 %v399, %v457
        %v470 = vmax.f32 %v466, 0.0
        %v471 = vmax.f32 %v467, 0.0
        %v472 = vmax.f32 %v468, 0.0
        %v473 = vmax.f32 %v469, 0.0
        %v474 = vadd.f32 %v462, %v470
        %v475 = vadd.f32 %v463, %v471
        %v476 = vadd.f32 %v464, %v472
        %v477 = vadd.f32 %v465, %v473
        %v478 = vadd.f32 %v436, %v454
        %v479 = vadd.f32 %v440, %v455
        %v480 = vadd.f32 %v446, %v456
        %v481 = vadd.f32 %v450, %v457
        %v482 = vmax.f32 %v478, 0.0
        %v483 = vmax.f32 %v479, 0.0
        %v484 = vmax.f32 %v480, 0.0
        %v485 = vmax.f32 %v481, 0.0
        %v486 = vadd.f32 %v474, %v482
        %v487 = vadd.f32 %v475, %v483
        %v488 = vadd.f32 %v476, %v484
        %v489 = vadd.f32 %v477, %v485
        %v490 = vadd.f32 %v438, %v454
        %v491 = vadd.f32 %v442, %v455
        %v492 = vadd.f32 %v448, %v456
        %v493 = vadd.f32 %v452, %v457
        %v494 = vmax.f32 %v490, 0.0
        %v495 = vmax.f32 %v491, 0.0
        %v496 = vmax.f32 %v492, 0.0
        %v497 = vmax.f32 %v493, 0.0
        %v498 = vadd.f32 %v486, %v494
        %v499 = vadd.f32 %v487, %v495
        %v500 = vadd.f32 %v488, %v496
        %v501 = vadd.f32 %v489, %v497
        %v502 = vld [vmem:[#allocation2] sm:$0xff]
        %v503 = vld [vmem:[#allocation2 + $0x8] sm:$0xff]
        %v504 = vld [vmem:[#allocation2 + $0x10] sm:$0xff]
        %v505 = vld [vmem:[#allocation2 + $0x18] sm:$0xff]
        %v506 = vadd.f32 %v502, %v498
        %v507 = vadd.f32 %v503, %v499
        %v508 = vadd.f32 %v504, %v500
        %v509 = vadd.f32 %v505, %v501
        %510 = vst [vmem:[#allocation2] sm:$0xff] %v506
        %511 = vst [vmem:[#allocation2 + $0x8] sm:$0xff] %v507
        %512 = vst [vmem:[#allocation2 + $0x10] sm:$0xff] %v508
        %513 = vst [vmem:[#allocation2 + $0x18] sm:$0xff] %v509
        %p514 = scmp.eq.s32.totalorder %s28, 1
        // Predicated region
        $region57: #{tpu_custom_call.1} parent=39 // pred_check
          %p515 = pneg %p514
        $region58: #{tpu_custom_call.1} parent=39 // pred_check_branch
          %517 = sbr.rel (%p515) target = $region60
        $region59: #{tpu_custom_call.1} parent=39 // pred_region
          %v518 = vld [vmem:[#allocation2] sm:$0xff]
          %v519 = vld [vmem:[#allocation2 + $0x8] sm:$0xff]
          %v520 = vld [vmem:[#allocation2 + $0x10] sm:$0xff]
          %v521 = vld [vmem:[#allocation2 + $0x18] sm:$0xff]
          %522 = vadd.xlane.f32.xlu0 %v518
          %v523 = vpop.xlane.xlu0 %522
          %524 = vadd.xlane.f32.xlu0 %v519
          %v525 = vpop.xlane.xlu0 %524
          %526 = vadd.xlane.f32.xlu0 %v520
          %v527 = vpop.xlane.xlu0 %526
          %528 = vadd.xlane.f32.xlu0 %v521
          %v529 = vpop.xlane.xlu0 %528
          %v530 = vmul.f32 %v523, 0.0009765625
          %v531 = vmul.f32 %v525, 0.0009765625
          %v532 = vmul.f32 %v527, 0.0009765625
          %v533 = vmul.f32 %v529, 0.0009765625
          %v534 = vld [vmem:[#allocation8] sm:$0xff]
          %v535 = vld [vmem:[#allocation8 + $0x8] sm:$0xff]
          %v536 = vld [vmem:[#allocation8 + $0x10] sm:$0xff]
          %v537 = vld [vmem:[#allocation8 + $0x18] sm:$0xff]
          %v538 = vmul.f32 %v534, %v530
          %v539 = vmul.f32 %v535, %v531
          %v540 = vmul.f32 %v536, %v532
          %v541 = vmul.f32 %v537, %v533
          %v542 = vadd.f32 %v538, %v539
          %v543 = vadd.f32 %v542, %v540
          %v544 = vadd.f32 %v543, %v541
          %v545 = vrot.slane %v544, 4
          %v546 = vadd.f32 %v544, %v545
          %v547 = vrot.slane %v546, 2
          %v548 = vadd.f32 %v546, %v547
          %v549 = vrot.slane %v548, 1
          %v550 = vadd.f32 %v548, %v549
          %v551 = vld [vmem:[%s4] sm:$0x1]
          %v552 = vadd.f32 %v550, %v551
          %553 = vst [vmem:[%s284] sm:$0x1] %v552
        $region60: #{tpu_custom_call.1} parent=39 // pred_fallthru
          _
        %s554 = sand.u32 %s155, 1
        %s555 = scalar_lea.sflag [#allocation5], %s554
        %s556 = sand.u32 %s155, 1
        %s557 = scalar_lea.vmem [#allocation9], %s556
        // Predicated region
        $region61: #{tpu_custom_call.1} parent=39 // pred_check
          %p558 = pneg %p165
        $region62: #{tpu_custom_call.1} parent=39 // pred_check_branch
          %560 = sbr.rel (%p558) target = $region64
        $region63: #{tpu_custom_call.1} parent=39 // pred_region
          %s562 = ssub.s32 16, 16
          %563 = vsyncadd %s555, %s562
          %s564 = smul.addr %s27, 16
          %s565 = scalar_lea.hbm %s5, %s564
          %s567 = sshll.u32 %s557, 4
          %s568 = int_to_ptr.vmem [resolvable:$true] %s567
          %570 = dma.vmem_to_hbm [thread:$0]  %s568, 16, %s565, %s555
        $region64: #{tpu_custom_call.1} parent=39 // pred_fallthru
          _
      $region40: #{tpu_custom_call.1} parent=5 // pred_fallthru
        _
      %p571 = scmp.le.s32.totalorder 2, %s18
      // Predicated region
      $region65: #{tpu_custom_call.1} parent=5 // pred_check
        %p572 = pneg %p571
      $region66: #{tpu_custom_call.1} parent=5 // pred_check_branch
        %574 = sbr.rel (%p572) target = $region68
      $region67: #{tpu_custom_call.1} parent=5 // pred_region
        %s575 = ssub.s32 %s18, 2
        // Predicated region
        $region69: #{tpu_custom_call.1} parent=67 // pred_check
          %p576 = pneg %p171
        $region70: #{tpu_custom_call.1} parent=67 // pred_check_branch
          %578 = sbr.rel (%p576) target = $region72
        $region71: #{tpu_custom_call.1} parent=67 // pred_region
          %s579 = sand.u32 %s156, 1
          %s580 = scalar_lea.sflag [#allocation5], %s579
          %s581 = sand.u32 %s156, 1
          %s582 = scalar_lea.vmem [#allocation9], %s581
          %583 = dma.done %s580, 16
        $region72: #{tpu_custom_call.1} parent=67 // pred_fallthru
          _
      $region68: #{tpu_custom_call.1} parent=5 // pred_fallthru
        _
    $region6: #{tpu_custom_call.1} parent=1 // loop_footer
      %s22 = sadd.s32 1, %s18
    $region7: #{tpu_custom_call.1} parent=1 // loop_footer_branch
      %17 = sbr.rel target = $region3
    $region8: #{tpu_custom_call.1} parent=1 // loop_exit
      _
    %584 = vsyncpa [#allocation4], 1
    %s585 = scalar_lea.sflag [#allocation4], 1
    %586 = vsyncpa %s585, 1
    %587 = vsyncpa [#allocation7], 1
    %588 = vsyncpa [#allocation5], 1
    %s589 = scalar_lea.sflag [#allocation5], 1
    %590 = vsyncpa %s589, 1

</llo_original>
